<compile_context>
chip_gen: v7x
topology: tpu7x:2x2x1
jax: 0.10.0
libtpu: 0.0.40
codegen_flags: <defaults>
</compile_context>

<pallas_src>
import math

import jax
import jax.numpy as jnp
from jax.experimental import pallas as pl
from jax.experimental.pallas import tpu as pltpu

# ---------------- configuration (module defaults, small batch) --------------
DIM = 64          # self.dim
HID = 32          # self.hidden_dim
NH = 4            # self.num_heads
BATCH = 2
LN_EPS = 1e-5

F_IN = NH * DIM   # 256  (flattened input/output feature width)
F_HID = NH * HID  # 128  (flattened hidden width)


def multihead_lima_kernel(theta_ref, w_in_ref, c0_ref, c1_ref, c2_ref,
                          w2_ref, avg_ref, ln_w_ref, ln_b_ref, out_ref):
    """Full forward pass for one batch tile (one grid point along batch)."""
    # fc_in: [tb, F_IN] @ [F_IN, F_HID] -> [tb, F_HID]
    h = jnp.dot(theta_ref[...], w_in_ref[...],
                preferred_element_type=jnp.float32)

    # Lima nonlinearity, one cosine per element (double-angle + Horner):
    #   o = c0 + c1*cos(h) + c2*cos(2h) = (c0-c2) + ch*(c1 + 2*c2*ch),  ch = cos(h)
    ch = jnp.cos(h)
    o = c0_ref[...] + ch * (c1_ref[...] + c2_ref[...] * ch)            # [tb, F_HID]

    # Fused (block-diag Theta) @ fc_out @ (I - avg): produces the already
    # mean-centered LayerNorm input in a single [tb,128]@[128,256] matmul.
    xc = jnp.dot(o, w2_ref[...],
                 preferred_element_type=jnp.float32)                   # [tb, F_IN]

    # Per-head biased variance via a block-diag averaging matmul (stays 256-lane dense).
    var = jnp.dot(xc * xc, avg_ref[...],
                  preferred_element_type=jnp.float32)                  # [tb, F_IN]
    y = xc * jax.lax.rsqrt(var + LN_EPS)

    # Single full-width, unmasked store.
    out_ref[...] = y * ln_w_ref[...] + ln_b_ref[...]


def preprocess_params(params):
    """Hoist all parameter-only math out of the per-call kernel path."""
    M = params["M"][0]
    b_a = (jax.nn.sigmoid(params["lima_shape"]) - 0.5) / 2.0        # [NH, HID]
    scale = M / (2.0 * (jnp.exp(params["proportion"]) + 1.0))       # [NH, HID]
    c0 = (M - scale * (1.0 + b_a)).reshape(1, F_HID)
    c1 = scale.reshape(1, F_HID)
    c2 = (scale * b_a).reshape(1, F_HID)
    # Horner / double-angle constant folding: o = c0p + ch*(c1 + c2p*ch)
    c0p = c0 - c2
    c2p = 2.0 * c2

    # Block-diagonal Theta operand: [F_HID, F_HID]
    theta_bd = jnp.zeros((F_HID, F_HID), jnp.float32)
    for hd in range(NH):
        theta_bd = theta_bd.at[hd * HID:(hd + 1) * HID,
                               hd * HID:(hd + 1) * HID].set(params["Theta"][hd])

    # Block-diagonal per-head averaging matrix: [F_IN, F_IN]
    avg = jnp.kron(jnp.eye(NH, dtype=jnp.float32),
                   jnp.full((DIM, DIM), 1.0 / DIM, jnp.float32))

    # Fuse Theta, fc_out and the LN mean-centering projection into one matrix:
    #   xc = o @ theta_bd @ w_out @ (I - avg) = o @ W2
    w2 = theta_bd @ params["w_out"] @ (jnp.eye(F_IN, dtype=jnp.float32) - avg)

    ln_w = jnp.tile(params["ln_w"], (1, NH))                        # [1, F_IN]
    ln_b = jnp.tile(params["ln_b"], (1, NH))                        # [1, F_IN]

    return {"w_in": params["w_in"], "c0": c0p, "c1": c1, "c2": c2p,
            "w2": w2, "avg": avg, "ln_w": ln_w, "ln_b": ln_b}


def _pick_tb(B):
    """Batch tile: full batch when small; 256-1024 rows with >=2 grid steps when big."""
    if B <= 256:
        return B
    for cand in (1024, 512, 256):
        if B % cand == 0 and B // cand >= 2:
            return cand
    # Ragged large batch: take a ~512-row tile and let the wrapper zero-pad.
    return min(512, B)


def multihead_lima(theta, pre, *, tb=None):
    """theta: [B, NH, DIM] float32 -> [B, NH, DIM] float32."""
    B = theta.shape[0]
    theta_flat = theta.reshape(B, F_IN)

    if tb is None:
        tb = _pick_tb(B)
    # Zero-pad ragged batches instead of asserting.
    Bp = ((B + tb - 1) // tb) * tb
    if Bp != B:
        theta_flat = jnp.pad(theta_flat, ((0, Bp - B), (0, 0)))
    grid = (Bp // tb,)

    def full(shape):
        return pl.BlockSpec(shape, lambda i: (0, 0))

    out_flat = pl.pallas_call(
        multihead_lima_kernel,
        out_shape=jax.ShapeDtypeStruct((Bp, F_IN), jnp.float32),
        grid=grid,
        in_specs=[
            pl.BlockSpec((tb, F_IN), lambda i: (i, 0)),   # theta (batch-tiled)
            full((F_IN, F_HID)),                          # W_in
            full((1, F_HID)),                             # c0'
            full((1, F_HID)),                             # c1
            full((1, F_HID)),                             # c2'
            full((F_HID, F_IN)),                          # fused W2
            full((F_IN, F_IN)),                           # averaging matrix (variance)
            full((1, F_IN)),                              # ln weight (tiled)
            full((1, F_IN)),                              # ln bias   (tiled)
        ],
        out_specs=pl.BlockSpec((tb, F_IN), lambda i: (i, 0)),
        compiler_params=pltpu.CompilerParams(
            dimension_semantics=("parallel",)),           # shards batch across TCs (v7x)
    )(theta_flat, pre["w_in"], pre["c0"], pre["c1"], pre["c2"],
      pre["w2"], pre["avg"], pre["ln_w"], pre["ln_b"])

    return out_flat[:B].reshape(B, NH, DIM)


def reference_forward(theta, params):
    """Pure-JAX replica of the PyTorch forward for verification."""
    B = theta.shape[0]
    M = params["M"][0]
    h = (theta.reshape(B, -1) @ params["w_in"]).reshape(B, NH, HID)
    b_a = (jax.nn.sigmoid(params["lima_shape"]) - 0.5) / 2.0
    scale = M / (2.0 * (jnp.exp(params["proportion"]) + 1.0))
    o = M + scale * (-1.0 - b_a + jnp.cos(h) + b_a * jnp.cos(2.0 * h))
    raw = jnp.einsum("bhm,hmn->bhn", o, params["Theta"])
    transed = (raw.reshape(B, -1) @ params["w_out"]).reshape(B, NH, DIM)
    mean = jnp.mean(transed, axis=-1, keepdims=True)
    var = jnp.mean((transed - mean) ** 2, axis=-1, keepdims=True)
    y = (transed - mean) * jax.lax.rsqrt(var + LN_EPS)
    return y * params["ln_w"][0] + params["ln_b"][0]


def init_params(key):
    k1, k2, k3, k4, k5 = jax.random.split(key, 5)
    # torch.nn.Linear stores weight [out, in]; we store the transposed matmul
    # operand directly so y = x @ W.
    bound_in = 1.0 / math.sqrt(NH * DIM)
    bound_out = 1.0 / math.sqrt(NH * HID)
    return {
        "w_in": jax.random.uniform(k1, (NH * DIM, NH * HID), jnp.float32,
                                   -bound_in, bound_in),
        "w_out": jax.random.uniform(k2, (NH * HID, NH * DIM), jnp.float32,
                                    -bound_out, bound_out),
        "proportion": jax.random.uniform(k3, (NH, HID), jnp.float32),
        "lima_shape": jax.random.uniform(k4, (NH, HID), jnp.float32),
        "Theta": jax.random.uniform(k5, (NH, HID, HID), jnp.float32) * 2.0 * jnp.pi
                 - jnp.pi,
        "ln_w": jnp.ones((1, DIM), jnp.float32),
        "ln_b": jnp.zeros((1, DIM), jnp.float32),
        "M": jnp.array([1.0], jnp.float32),   # fix_max_value = 1
    }


if __name__ == "__main__":
    key = jax.random.PRNGKey(0)
    pkey, xkey = jax.random.split(key)
    params = init_params(pkey)
    pre = preprocess_params(params)
    theta = jax.random.normal(xkey, (BATCH, NH, DIM), jnp.float32)

    out = multihead_lima(theta, pre)
    out = jax.block_until_ready(out)

    ref = reference_forward(theta, params)
    assert out.shape == (BATCH, NH, DIM)
    assert jnp.allclose(out, ref, atol=1e-4, rtol=1e-4), "mismatch vs reference"

    print("KERNEL_OK")
</pallas_src>

<mosaic_0001>
module attributes {stable_mosaic.version = 11 : i64} {
  func.func @multihead_lima_kernel(%arg0: i32, %arg1: memref<2x256xf32, #tpu.memory_space<vmem>>, %arg2: memref<256x128xf32, #tpu.memory_space<vmem>>, %arg3: memref<1x128xf32, #tpu.memory_space<vmem>>, %arg4: memref<1x128xf32, #tpu.memory_space<vmem>>, %arg5: memref<1x128xf32, #tpu.memory_space<vmem>>, %arg6: memref<128x256xf32, #tpu.memory_space<vmem>>, %arg7: memref<256x256xf32, #tpu.memory_space<vmem>>, %arg8: memref<1x256xf32, #tpu.memory_space<vmem>>, %arg9: memref<1x256xf32, #tpu.memory_space<vmem>>, %arg10: memref<2x256xf32, #tpu.memory_space<vmem>>) attributes {dimension_semantics = [#tpu.dimension_semantics<parallel>], iteration_bounds = array<i64: 1>, scalar_prefetch = 0 : i64, scratch_operands = 0 : i64, tpu.core_type = #tpu.core_type<tc>, window_params = [{transform_indices = @transform_0, window_bounds = array<i64: 2, 256>}, {pipeline_mode = #tpu.pipeline_mode<synchronous>, transform_indices = @transform_1, window_bounds = array<i64: 256, 128>}, {pipeline_mode = #tpu.pipeline_mode<synchronous>, transform_indices = @transform_2, window_bounds = array<i64: 1, 128>}, {pipeline_mode = #tpu.pipeline_mode<synchronous>, transform_indices = @transform_3, window_bounds = array<i64: 1, 128>}, {pipeline_mode = #tpu.pipeline_mode<synchronous>, transform_indices = @transform_4, window_bounds = array<i64: 1, 128>}, {pipeline_mode = #tpu.pipeline_mode<synchronous>, transform_indices = @transform_5, window_bounds = array<i64: 128, 256>}, {pipeline_mode = #tpu.pipeline_mode<synchronous>, transform_indices = @transform_6, window_bounds = array<i64: 256, 256>}, {pipeline_mode = #tpu.pipeline_mode<synchronous>, transform_indices = @transform_7, window_bounds = array<i64: 1, 256>}, {pipeline_mode = #tpu.pipeline_mode<synchronous>, transform_indices = @transform_8, window_bounds = array<i64: 1, 256>}, {transform_indices = @transform_9, window_bounds = array<i64: 2, 256>}]} {
    %c0 = arith.constant 0 : index
    %c0_0 = arith.constant 0 : index
    %0 = vector.load %arg1[%c0, %c0_0] : memref<2x256xf32, #tpu.memory_space<vmem>>, vector<2x256xf32>
    %c0_1 = arith.constant 0 : index
    %c0_2 = arith.constant 0 : index
    %1 = vector.load %arg2[%c0_1, %c0_2] : memref<256x128xf32, #tpu.memory_space<vmem>>, vector<256x128xf32>
    %cst = arith.constant dense<0.000000e+00> : vector<2x128xf32>
    %2 = tpu.matmul %0, %1, %cst {dimension_numbers = #tpu.dot_dimension_numbers<[1], [0], [0], [1], [0, 0, 1, 1], [], []>} : vector<2x256xf32>, vector<256x128xf32>, vector<2x128xf32> -> vector<2x128xf32>
    %3 = math.cos %2 : vector<2x128xf32>
    %c0_3 = arith.constant 0 : index
    %c0_4 = arith.constant 0 : index
    %4 = vector.load %arg3[%c0_3, %c0_4] : memref<1x128xf32, #tpu.memory_space<vmem>>, vector<1x128xf32>
    %c0_5 = arith.constant 0 : index
    %c0_6 = arith.constant 0 : index
    %5 = vector.load %arg4[%c0_5, %c0_6] : memref<1x128xf32, #tpu.memory_space<vmem>>, vector<1x128xf32>
    %c0_7 = arith.constant 0 : index
    %c0_8 = arith.constant 0 : index
    %6 = vector.load %arg5[%c0_7, %c0_8] : memref<1x128xf32, #tpu.memory_space<vmem>>, vector<1x128xf32>
    %7 = vector.broadcast %6 : vector<1x128xf32> to vector<2x128xf32>
    %8 = arith.mulf %7, %3 : vector<2x128xf32>
    %9 = vector.broadcast %5 : vector<1x128xf32> to vector<2x128xf32>
    %10 = arith.addf %9, %8 : vector<2x128xf32>
    %11 = arith.mulf %3, %10 : vector<2x128xf32>
    %12 = vector.broadcast %4 : vector<1x128xf32> to vector<2x128xf32>
    %13 = arith.addf %12, %11 : vector<2x128xf32>
    %c0_9 = arith.constant 0 : index
    %c0_10 = arith.constant 0 : index
    %14 = vector.load %arg6[%c0_9, %c0_10] : memref<128x256xf32, #tpu.memory_space<vmem>>, vector<128x256xf32>
    %cst_11 = arith.constant dense<0.000000e+00> : vector<2x256xf32>
    %15 = tpu.matmul %13, %14, %cst_11 {dimension_numbers = #tpu.dot_dimension_numbers<[1], [0], [0], [1], [0, 0, 1, 1], [], []>} : vector<2x128xf32>, vector<128x256xf32>, vector<2x256xf32> -> vector<2x256xf32>
    %16 = arith.mulf %15, %15 : vector<2x256xf32>
    %c0_12 = arith.constant 0 : index
    %c0_13 = arith.constant 0 : index
    %17 = vector.load %arg7[%c0_12, %c0_13] : memref<256x256xf32, #tpu.memory_space<vmem>>, vector<256x256xf32>
    %cst_14 = arith.constant dense<0.000000e+00> : vector<2x256xf32>
    %18 = tpu.matmul %16, %17, %cst_14 {dimension_numbers = #tpu.dot_dimension_numbers<[1], [0], [0], [1], [0, 0, 1, 1], [], []>} : vector<2x256xf32>, vector<256x256xf32>, vector<2x256xf32> -> vector<2x256xf32>
    %cst_15 = arith.constant 9.99999974E-6 : f32
    %19 = vector.broadcast %cst_15 : f32 to vector<2x256xf32>
    %20 = arith.addf %18, %19 : vector<2x256xf32>
    %21 = math.rsqrt %20 : vector<2x256xf32>
    %22 = arith.mulf %15, %21 : vector<2x256xf32>
    %c0_16 = arith.constant 0 : index
    %c0_17 = arith.constant 0 : index
    %23 = vector.load %arg8[%c0_16, %c0_17] : memref<1x256xf32, #tpu.memory_space<vmem>>, vector<1x256xf32>
    %24 = vector.broadcast %23 : vector<1x256xf32> to vector<2x256xf32>
    %25 = arith.mulf %22, %24 : vector<2x256xf32>
    %c0_18 = arith.constant 0 : index
    %c0_19 = arith.constant 0 : index
    %26 = vector.load %arg9[%c0_18, %c0_19] : memref<1x256xf32, #tpu.memory_space<vmem>>, vector<1x256xf32>
    %27 = vector.broadcast %26 : vector<1x256xf32> to vector<2x256xf32>
    %28 = arith.addf %25, %27 : vector<2x256xf32>
    %c0_20 = arith.constant 0 : index
    %c0_21 = arith.constant 0 : index
    %29 = vector.load %arg10[%c0_20, %c0_21] : memref<2x256xf32, #tpu.memory_space<vmem>>, vector<2x256xf32>
    tpu.vector_store %arg10[%c0_20, %c0_21], %28 {strides = array<i32>} : memref<2x256xf32, #tpu.memory_space<vmem>>, vector<2x256xf32>,
    return
  }
  func.func @transform_0(%arg0: i32) -> (i32, i32) {
    %c0_i32 = arith.constant 0 : i32
    %c0_i32_0 = arith.constant 0 : i32
    return %arg0, %c0_i32 : i32, i32
  }
  func.func @transform_1(%arg0: i32) -> (i32, i32) {
    %c0_i32 = arith.constant 0 : i32
    %c0_i32_0 = arith.constant 0 : i32
    %c0_i32_1 = arith.constant 0 : i32
    return %c0_i32, %c0_i32_0 : i32, i32
  }
  func.func @transform_2(%arg0: i32) -> (i32, i32) {
    %c0_i32 = arith.constant 0 : i32
    %c0_i32_0 = arith.constant 0 : i32
    %c0_i32_1 = arith.constant 0 : i32
    return %c0_i32, %c0_i32_0 : i32, i32
  }
  func.func @transform_3(%arg0: i32) -> (i32, i32) {
    %c0_i32 = arith.constant 0 : i32
    %c0_i32_0 = arith.constant 0 : i32
    %c0_i32_1 = arith.constant 0 : i32
    return %c0_i32, %c0_i32_0 : i32, i32
  }
  func.func @transform_4(%arg0: i32) -> (i32, i32) {
    %c0_i32 = arith.constant 0 : i32
    %c0_i32_0 = arith.constant 0 : i32
    %c0_i32_1 = arith.constant 0 : i32
    return %c0_i32, %c0_i32_0 : i32, i32
  }
  func.func @transform_5(%arg0: i32) -> (i32, i32) {
    %c0_i32 = arith.constant 0 : i32
    %c0_i32_0 = arith.constant 0 : i32
    %c0_i32_1 = arith.constant 0 : i32
    return %c0_i32, %c0_i32_0 : i32, i32
  }
  func.func @transform_6(%arg0: i32) -> (i32, i32) {
    %c0_i32 = arith.constant 0 : i32
    %c0_i32_0 = arith.constant 0 : i32
    %c0_i32_1 = arith.constant 0 : i32
    return %c0_i32, %c0_i32_0 : i32, i32
  }
  func.func @transform_7(%arg0: i32) -> (i32, i32) {
    %c0_i32 = arith.constant 0 : i32
    %c0_i32_0 = arith.constant 0 : i32
    %c0_i32_1 = arith.constant 0 : i32
    return %c0_i32, %c0_i32_0 : i32, i32
  }
  func.func @transform_8(%arg0: i32) -> (i32, i32) {
    %c0_i32 = arith.constant 0 : i32
    %c0_i32_0 = arith.constant 0 : i32
    %c0_i32_1 = arith.constant 0 : i32
    return %c0_i32, %c0_i32_0 : i32, i32
  }
  func.func @transform_9(%arg0: i32) -> (i32, i32) {
    %c0_i32 = arith.constant 0 : i32
    %c0_i32_0 = arith.constant 0 : i32
    return %arg0, %c0_i32 : i32, i32
  }
}

</mosaic_0001>

<llo_original>
// kernel: tpu_custom_call.1
$region0: #{tpu_custom_call.1}
  #allocation0 [shape = 'u32[]', space=smem, size = 0x4, offset = 0x4, fixed_abs, tag = 'smem constant byte address 0x4 - core index']
  #allocation1 [shape = 'u32[144,128]{1,0:T(1,128)}', space=vmem, size = 0x12000, scoped, tag = 'internal scratch']
  %s0 = inlined_call_operand.hbm [shape: f32[2,256], index: 0, kind: input, shape index: {}]
  %s1 = inlined_call_operand.hbm [shape: f32[256,128], index: 1, kind: input, shape index: {}]
  %s2 = inlined_call_operand.vmem [shape: f32[1,128], index: 2, kind: input, shape index: {}]
  %s3 = inlined_call_operand.vmem [shape: f32[1,128], index: 3, kind: input, shape index: {}]
  %s4 = inlined_call_operand.vmem [shape: f32[1,128], index: 4, kind: input, shape index: {}]
  %s5 = inlined_call_operand.hbm [shape: f32[128,256], index: 5, kind: input, shape index: {}]
  %s6 = inlined_call_operand.hbm [shape: f32[256,256], index: 6, kind: input, shape index: {}]
  %s7 = inlined_call_operand.vmem [shape: f32[1,256], index: 7, kind: input, shape index: {}]
  %s8 = inlined_call_operand.vmem [shape: f32[1,256], index: 8, kind: input, shape index: {}]
  %s9 = inlined_call_operand.hbm [shape: f32[2,256], index: 9, kind: output, shape index: {}]
  %s10 = sld [smem:[#allocation0]]
  $region62: #{tpu_custom_call.1} parent=0
    _
  %s12 = ssub.s32 1, %s10
  %s13 = scalar_select 0, %s12, %s10
  $region1: #{tpu_custom_call.1} parent=0
    #allocation2 [shape = 'u8[2048]{0}', space=vmem, size = 0x800, scoped, tag = 'input window, operand 0, single buffered']
    #allocation3 [shape = 's32[1]{0}', space=sflag, size = 0x4, scoped, tag = 'scoped memory for tpu_custom_call.1']
    #allocation4 [shape = 's32[1]{0}', space=sflag, size = 0x4, scoped, tag = 'scoped memory for tpu_custom_call.1']
    #allocation5 [shape = 'u8[131072]{0}', space=vmem, size = 0x20000, scoped, tag = 'input window, operand 1, single buffered']
    #allocation6 [shape = 's32[1]{0}', space=sflag, size = 0x4, scoped, tag = 'scoped memory for tpu_custom_call.1']
    #allocation7 [shape = 'u8[131072]{0}', space=vmem, size = 0x20000, scoped, tag = 'input window, operand 5, single buffered']
    #allocation8 [shape = 'u8[262144]{0}', space=vmem, size = 0x40000, scoped, tag = 'input window, operand 6, single buffered']
    #allocation9 [shape = 's32[1]{0}', space=sflag, size = 0x4, scoped, tag = 'scoped memory for tpu_custom_call.1']
    #allocation10 [shape = 'u8[2048]{0}', space=vmem, size = 0x800, scoped, tag = 'output window, operand 0, single buffered']
    %14 = vsyncpa [#allocation3], 0
    %15 = vsyncpa [#allocation6], 0
    %16 = vsyncpa [#allocation9], 0
    %17 = vsyncpa [#allocation4], 0
    // Predicated region
    $region2: #{tpu_custom_call.1} parent=1 // pred_check
      _
    $region3: #{tpu_custom_call.1} parent=1 // pred_check_branch
      %19 = sbr.rel (0) target = $region5
    $region4: #{tpu_custom_call.1} parent=1 // pred_region
      %s21 = ssub.s32 64, 64
      %22 = vsyncadd [#allocation3], %s21
      %s24 = sshll.u32 [#allocation2], 4
      %s25 = int_to_ptr.vmem [resolvable:$true] %s24
      %27 = dma.hbm_to_vmem [thread:$0]  %s0, 64, %s25, [#allocation3]
    $region5: #{tpu_custom_call.1} parent=1 // pred_fallthru
      _
    // Predicated region
    $region6: #{tpu_custom_call.1} parent=1 // pred_check
      _
    $region7: #{tpu_custom_call.1} parent=1 // pred_check_branch
      %29 = sbr.rel (0) target = $region9
    $region8: #{tpu_custom_call.1} parent=1 // pred_region
      %s31 = ssub.s32 4096, 4096
      %32 = vsyncadd [#allocation6], %s31
      %s33 = sshll.u32 [#allocation5], 4
      %s34 = int_to_ptr.vmem [resolvable:$true] %s33
      %39 = dma.hbm_to_vmem [thread:$0]  %s1, 4096, %s34, [#allocation6], 128, 128, 8
    $region9: #{tpu_custom_call.1} parent=1 // pred_fallthru
      _
    // Predicated region
    $region10: #{tpu_custom_call.1} parent=1 // pred_check
      _
    $region11: #{tpu_custom_call.1} parent=1 // pred_check_branch
      %41 = sbr.rel (0) target = $region13
    $region12: #{tpu_custom_call.1} parent=1 // pred_region
      _
    $region13: #{tpu_custom_call.1} parent=1 // pred_fallthru
      _
    // Predicated region
    $region14: #{tpu_custom_call.1} parent=1 // pred_check
      _
    $region15: #{tpu_custom_call.1} parent=1 // pred_check_branch
      %43 = sbr.rel (0) target = $region17
    $region16: #{tpu_custom_call.1} parent=1 // pred_region
      _
    $region17: #{tpu_custom_call.1} parent=1 // pred_fallthru
      _
    // Predicated region
    $region18: #{tpu_custom_call.1} parent=1 // pred_check
      _
    $region19: #{tpu_custom_call.1} parent=1 // pred_check_branch
      %45 = sbr.rel (0) target = $region21
    $region20: #{tpu_custom_call.1} parent=1 // pred_region
      _
    $region21: #{tpu_custom_call.1} parent=1 // pred_fallthru
      _
    // Predicated region
    $region22: #{tpu_custom_call.1} parent=1 // pred_check
      _
    $region23: #{tpu_custom_call.1} parent=1 // pred_check_branch
      %47 = sbr.rel (0) target = $region25
    $region24: #{tpu_custom_call.1} parent=1 // pred_region
      %s49 = ssub.s32 4096, 4096
      %50 = vsyncadd [#allocation6], %s49
      %s51 = sshll.u32 [#allocation7], 4
      %s52 = int_to_ptr.vmem [resolvable:$true] %s51
      %57 = dma.hbm_to_vmem [thread:$0]  %s5, 4096, %s52, [#allocation6], 256, 256, 16
    $region25: #{tpu_custom_call.1} parent=1 // pred_fallthru
      _
    // Predicated region
    $region26: #{tpu_custom_call.1} parent=1 // pred_check
      _
    $region27: #{tpu_custom_call.1} parent=1 // pred_check_branch
      %59 = sbr.rel (0) target = $region29
    $region28: #{tpu_custom_call.1} parent=1 // pred_region
      %s61 = ssub.s32 8192, 8192
      %62 = vsyncadd [#allocation9], %s61
      %s63 = sshll.u32 [#allocation8], 4
      %s64 = int_to_ptr.vmem [resolvable:$true] %s63
      %69 = dma.hbm_to_vmem [thread:$0]  %s6, 8192, %s64, [#allocation9], 256, 256, 16
    $region29: #{tpu_custom_call.1} parent=1 // pred_fallthru
      _
    // Predicated region
    $region30: #{tpu_custom_call.1} parent=1 // pred_check
      _
    $region31: #{tpu_custom_call.1} parent=1 // pred_check_branch
      %71 = sbr.rel (0) target = $region33
    $region32: #{tpu_custom_call.1} parent=1 // pred_region
      _
    $region33: #{tpu_custom_call.1} parent=1 // pred_fallthru
      _
    // Predicated region
    $region34: #{tpu_custom_call.1} parent=1 // pred_check
      _
    $region35: #{tpu_custom_call.1} parent=1 // pred_check_branch
      %73 = sbr.rel (0) target = $region37
    $region36: #{tpu_custom_call.1} parent=1 // pred_region
      _
    $region37: #{tpu_custom_call.1} parent=1 // pred_fallthru
      _
    // Predicated region
    $region38: #{tpu_custom_call.1} parent=1 // pred_check
      _
    $region39: #{tpu_custom_call.1} parent=1 // pred_check_branch
      %75 = sbr.rel (0) target = $region41
    $region40: #{tpu_custom_call.1} parent=1 // pred_region
      %76 = dma.done [#allocation3], 64
    $region41: #{tpu_custom_call.1} parent=1 // pred_fallthru
      _
    // Predicated region
    $region42: #{tpu_custom_call.1} parent=1 // pred_check
      _
    $region43: #{tpu_custom_call.1} parent=1 // pred_check_branch
      %78 = sbr.rel (0) target = $region45
    $region44: #{tpu_custom_call.1} parent=1 // pred_region
      %79 = dma.done [#allocation6], 4096
    $region45: #{tpu_custom_call.1} parent=1 // pred_fallthru
      _
    // Predicated region
    $region46: #{tpu_custom_call.1} parent=1 // pred_check
      _
    $region47: #{tpu_custom_call.1} parent=1 // pred_check_branch
      %81 = sbr.rel (0) target = $region49
    $region48: #{tpu_custom_call.1} parent=1 // pred_region
      %82 = dma.done [#allocation6], 4096
    $region49: #{tpu_custom_call.1} parent=1 // pred_fallthru
      _
    // Predicated region
    $region50: #{tpu_custom_call.1} parent=1 // pred_check
      _
    $region51: #{tpu_custom_call.1} parent=1 // pred_check_branch
      %84 = sbr.rel (0) target = $region53
    $region52: #{tpu_custom_call.1} parent=1 // pred_region
      %85 = dma.done [#allocation9], 8192
    $region53: #{tpu_custom_call.1} parent=1 // pred_fallthru
      _
    %v86 = vld [vmem:[#allocation2] sm:$0xf]
    %v87 = vld [vmem:[#allocation5] sm:$0xff]
    %v88 = vld [vmem:[#allocation5 + $0x8] sm:$0xff]
    %v89 = vld [vmem:[#allocation5 + $0x10] sm:$0xff]
    %v90 = vld [vmem:[#allocation5 + $0x18] sm:$0xff]
    %v91 = vld [vmem:[#allocation5 + $0x20] sm:$0xff]
    %v92 = vld [vmem:[#allocation5 + $0x28] sm:$0xff]
    %v93 = vld [vmem:[#allocation5 + $0x30] sm:$0xff]
    %v94 = vld [vmem:[#allocation5 + $0x38] sm:$0xff]
    %v95 = vld [vmem:[#allocation5 + $0x40] sm:$0xff]
    %v96 = vld [vmem:[#allocation5 + $0x48] sm:$0xff]
    %v97 = vld [vmem:[#allocation5 + $0x50] sm:$0xff]
    %v98 = vld [vmem:[#allocation5 + $0x58] sm:$0xff]
    %v99 = vld [vmem:[#allocation5 + $0x60] sm:$0xff]
    %v100 = vld [vmem:[#allocation5 + $0x68] sm:$0xff]
    %v101 = vld [vmem:[#allocation5 + $0x70] sm:$0xff]
    %v102 = vld [vmem:[#allocation5 + $0x78] sm:$0xff]
    %v103 = vld [vmem:[#allocation5 + $0x80] sm:$0xff]
    %v104 = vld [vmem:[#allocation5 + $0x88] sm:$0xff]
    %v105 = vld [vmem:[#allocation5 + $0x90] sm:$0xff]
    %v106 = vld [vmem:[#allocation5 + $0x98] sm:$0xff]
    %v107 = vld [vmem:[#allocation5 + $0xa0] sm:$0xff]
    %v108 = vld [vmem:[#allocation5 + $0xa8] sm:$0xff]
    %v109 = vld [vmem:[#allocation5 + $0xb0] sm:$0xff]
    %v110 = vld [vmem:[#allocation5 + $0xb8] sm:$0xff]
    %v111 = vld [vmem:[#allocation5 + $0xc0] sm:$0xff]
    %v112 = vld [vmem:[#allocation5 + $0xc8] sm:$0xff]
    %v113 = vld [vmem:[#allocation5 + $0xd0] sm:$0xff]
    %v114 = vld [vmem:[#allocation5 + $0xd8] sm:$0xff]
    %v115 = vld [vmem:[#allocation5 + $0xe0] sm:$0xff]
    %v116 = vld [vmem:[#allocation5 + $0xe8] sm:$0xff]
    %v117 = vld [vmem:[#allocation5 + $0xf0] sm:$0xff]
    %v118 = vld [vmem:[#allocation5 + $0xf8] sm:$0xff]
    %v121 = vunpack.c.l.s4 1983009808
    %v122 = vunpack.c.0.s8 %v121
    %v123 = vlaneseq
    %v124 = vshrl.u32 %v123, 7
    %v125 = vsub.s32 %v122, %v124
    %v126 = vrot.slane %v86, %v125
    %v127 = vcombine.high %v126, %v126
    %130 = vmatprep.subr.mxu0 0.0
    %131 = vmatpush1.msra.mxu0 %v87
    %132 = vmatprep.subr.mxu0 0.0
    %133 = vmatpush1.msra.mxu0 %v88
    %134 = vmatprep.subr.mxu0 0.0
    %135 = vmatpush1.msra.mxu0 %v89
    %136 = vmatprep.subr.mxu0 0.0
    %137 = vmatpush1.msra.mxu0 %v90
    %138 = vmatprep.subr.mxu0 0.0
    %139 = vmatpush1.msra.mxu0 %v91
    %140 = vmatprep.subr.mxu0 0.0
    %141 = vmatpush1.msra.mxu0 %v92
    %142 = vmatprep.subr.mxu0 0.0
    %143 = vmatpush1.msra.mxu0 %v93
    %144 = vmatprep.subr.mxu0 0.0
    %145 = vmatpush1.msra.mxu0 %v94
    %146 = vmatprep.subr.mxu0 0.0
    %147 = vmatpush1.msra.mxu0 %v95
    %148 = vmatprep.subr.mxu0 0.0
    %149 = vmatpush1.msra.mxu0 %v96
    %150 = vmatprep.subr.mxu0 0.0
    %151 = vmatpush1.msra.mxu0 %v97
    %152 = vmatprep.subr.mxu0 0.0
    %153 = vmatpush1.msra.mxu0 %v98
    %154 = vmatprep.subr.mxu0 0.0
    %155 = vmatpush1.msra.mxu0 %v99
    %156 = vmatprep.subr.mxu0 0.0
    %157 = vmatpush1.msra.mxu0 %v100
    %158 = vmatprep.subr.mxu0 0.0
    %159 = vmatpush1.msra.mxu0 %v101
    %160 = vmatprep.subr.mxu0 0.0
    %161 = vmatpush1.msra.mxu0 %v102
    %162 = vmatprep.subr.mxu0 0.0
    %163 = vmatpush1.msra.mxu0 %v103
    %164 = vmatprep.subr.mxu0 0.0
    %165 = vmatpush1.msra.mxu0 %v104
    %166 = vmatprep.subr.mxu0 0.0
    %167 = vmatpush1.msra.mxu0 %v105
    %168 = vmatprep.subr.mxu0 0.0
    %169 = vmatpush1.msra.mxu0 %v106
    %170 = vmatprep.subr.mxu0 0.0
    %171 = vmatpush1.msra.mxu0 %v107
    %172 = vmatprep.subr.mxu0 0.0
    %173 = vmatpush1.msra.mxu0 %v108
    %174 = vmatprep.subr.mxu0 0.0
    %175 = vmatpush1.msra.mxu0 %v109
    %176 = vmatprep.subr.mxu0 0.0
    %177 = vmatpush1.msra.mxu0 %v110
    %178 = vmatprep.subr.mxu0 0.0
    %179 = vmatpush1.msra.mxu0 %v111
    %180 = vmatprep.subr.mxu0 0.0
    %181 = vmatpush1.msra.mxu0 %v112
    %182 = vmatprep.subr.mxu0 0.0
    %183 = vmatpush1.msra.mxu0 %v113
    %184 = vmatprep.subr.mxu0 0.0
    %185 = vmatpush1.msra.mxu0 %v114
    %186 = vmatprep.subr.mxu0 0.0
    %187 = vmatpush1.msra.mxu0 %v115
    %188 = vmatprep.subr.mxu0 0.0
    %189 = vmatpush1.msra.mxu0 %v116
    %190 = vmatprep.subr.mxu0 0.0
    %191 = vmatpush1.msra.mxu0 %v117
    %192 = vmatprep.subr.mxu0 0.0
    %193 = vmatpush1.msra.mxu0 %v118
    %194 = vmatprep.mubr.f32.mxu0 %v127
    %195 = vmatmul.mubr.f32.gmra.mrb[0].mxu0 %v126
    %v196 = vpop.f32.mrb[0].mxu0
    %v197 = vadd.f32 0.0, %v196
    %v198 = vpop.f32.mrb[0].mxu0
    %199 = vdwg.mxu0
    %v200 = vand.u32 2147483647, %v197
    %vm201 = vcmp.le.f32.partialorder %v200, 0.7853982
    %vm202 = vcmp.lt.s32.totalorder %v197, 0
    %v203 = vand.u32 %v197, 2139095040
    %v204 = vshrl.u32 %v203, 23
    %v205 = vsub.s32 %v204, 127
    %v206 = vand.u32 2147483647, %v197
    %v207 = vand.u32 %v206, 8388607
    %v208 = vor.u32 %v207, 8388608
    %v209 = vsub.s32 0, %v208
    %v210 = vadd.s32 %v205, 1
    %vm211 = vcmp.gt.s32.totalorder %v210, 0
    %v212 = vsel %vm211, %v210, 0
    %v213 = vshrl.u32 %v212, 5
    %v214 = vand.u32 %v212, 31
    %v215 = vsub.s32 32, %v214
    %v216 = vshrl.u32 683565275, %v215
    %v217 = vshll.u32 683565275, %v214
    %v218 = vshrl.u32 2475754826, %v215
    %v219 = vor.u32 %v217, %v218
    %v220 = vshll.u32 2475754826, %v214
    %v221 = vshrl.u32 2131351028, %v215
    %v222 = vor.u32 %v220, %v221
    %v223 = vshll.u32 2131351028, %v214
    %v224 = vshrl.u32 2102212464, %v215
    %v225 = vor.u32 %v223, %v224
    %v226 = vshll.u32 2102212464, %v214
    %v227 = vshrl.u32 920167782, %v215
    %v228 = vor.u32 %v226, %v227
    %v229 = vshll.u32 920167782, %v214
    %v230 = vshrl.u32 1326507024, %v215
    %v231 = vor.u32 %v229, %v230
    %vm232 = vcmp.lt.s32.totalorder %v213, 1
    %vm233 = vcmp.lt.s32.totalorder %v213, 2
    %vm234 = vcmp.lt.s32.totalorder %v213, 3
    %vm235 = vcmp.lt.s32.totalorder %v213, 4
    %v236 = vsel %vm232, %v216, %v219
    %v237 = vsel %vm235, %v225, 2102212464
    %v238 = vsel %vm234, %v222, %v237
    %v239 = vsel %vm233, %v236, %v238
    %v240 = vsel %vm232, %v219, %v222
    %v241 = vsel %vm235, %v228, 920167782
    %v242 = vsel %vm234, %v225, %v241
    %v243 = vsel %vm233, %v240, %v242
    %v244 = vsel %vm232, %v222, %v225
    %v245 = vsel %vm235, %v231, 1326507024
    %v246 = vsel %vm234, %v228, %v245
    %v247 = vsel %vm233, %v244, %v246
    %v248 = vshll.u32 %v208, 8
    %v249 = vmul.u32.u64.compose %v248, %v247
    %v250 = vextract.low.u32 %v249
    %v251 = vextract.high.u32 %v249
    %v252 = vmul.u32.u64.compose %v248, %v243
    %v253 = vextract.low.u32 %v252
    %v254 = vextract.high.u32 %v252
    %v255 = vmul.u32 %v248, %v239
    %v256 = vadd.s32 %v251, %v253
    %vm257 = vc.u32 %v251, %v253
    %v258 = vadd.s32 %v254, 1
    %v259 = vsel %vm257, %v258, %v254
    %v260 = vadd.s32 %v255, %v259
    %v261 = vadd.s32 %v260, 536870912
    %v262 = vshrl.u32 %v261, 30
    %v263 = vshll.u32 %v262, 30
    %v264 = vsub.s32 %v260, %v263
    %vm265 = vcmp.lt.s32.totalorder %v264, 0
    %v266 = vsub.s32 0, %v264
    %v267 = vsel %vm265, %v266, %v264
    %v268 = vclz %v267
    %v269 = vsub.s32 %v268, 2
    %vm270 = vcmp.gt.s32.totalorder 0, %v269
    %v271 = vsel %vm270, 0, %v269
    %v272 = vsub.s32 32, %v271
    %v273 = vshll.u32 %v264, %v271
    %v274 = vshrl.u32 %v256, %v272
    %v275 = vor.u32 %v273, %v274
    %v276 = vsub.s32 4294967266, %v271
    %v277 = vadd.s32 %v276, 127
    %v278 = vshll.u32 %v277, 23
    %v279 = vor.u32 4788187, %v278
    %v280 = vand.u32 2147483647, %v279
    %v282 = vcvt.s32.f32 %v275
    %v283 = vmul.f32 %v282, %v280
    %v284 = vxor.u32 %v283, 2147483648
    %v285 = vsel %vm202, %v284, %v283
    %v286 = vsub.s32 4, %v262
    %v287 = vsel %vm202, %v286, %v262
    %v288 = vsel %vm201, %v197, %v285
    %v289 = vsel %vm201, 0, %v287
    %v290 = vcosq.f32.pop %v288
    %v291 = vsinq.f32.pop %v288
    %vm292 = vweird.f32 %v197
    %v293 = vand.u32 %v289, 3
    %vm294 = vcmp.lt.s32.totalorder %v293, 2
    %vm295 = vcmp.eq.s32.totalorder %v293, 0
    %v296 = vxor.u32 %v291, 2147483648
    %v297 = vsel %vm295, %v290, %v296
    %vm298 = vcmp.eq.s32.totalorder %v293, 2
    %v299 = vxor.u32 %v290, 2147483648
    %v300 = vsel %vm298, %v299, %v291
    %v301 = vsel %vm294, %v297, %v300
    %v302 = vsel %vm292, nan, %v301
    %v303 = vld [vmem:[%s2] sm:$0x1]
    %v304 = vld [vmem:[%s3] sm:$0x1]
    %v305 = vld [vmem:[%s4] sm:$0x1]
    %v307 = vlaneseq
    %v308 = vshrl.u32 %v307, 7
    %v309 = vsub.s32 0, %v308
    %v310 = vrot.slane %v305, %v309
    %v312 = vmul.f32 %v310, %v302
    %v314 = vlaneseq
    %v315 = vshrl.u32 %v314, 7
    %v316 = vsub.s32 0, %v315
    %v317 = vrot.slane %v304, %v316
    %v319 = vadd.f32 %v317, %v312
    %v320 = vmul.f32 %v302, %v319
    %v322 = vlaneseq
    %v323 = vshrl.u32 %v322, 7
    %v324 = vsub.s32 0, %v323
    %v325 = vrot.slane %v303, %v324
    %v327 = vadd.f32 %v325, %v320
    %v328 = vld [vmem:[#allocation7] sm:$0xff]
    %v329 = vld [vmem:[#allocation7 + $0x8] sm:$0xff]
    %v330 = vld [vmem:[#allocation7 + $0x10] sm:$0xff]
    %v331 = vld [vmem:[#allocation7 + $0x18] sm:$0xff]
    %v332 = vld [vmem:[#allocation7 + $0x20] sm:$0xff]
    %v333 = vld [vmem:[#allocation7 + $0x28] sm:$0xff]
    %v334 = vld [vmem:[#allocation7 + $0x30] sm:$0xff]
    %v335 = vld [vmem:[#allocation7 + $0x38] sm:$0xff]
    %v336 = vld [vmem:[#allocation7 + $0x40] sm:$0xff]
    %v337 = vld [vmem:[#allocation7 + $0x48] sm:$0xff]
    %v338 = vld [vmem:[#allocation7 + $0x50] sm:$0xff]
    %v339 = vld [vmem:[#allocation7 + $0x58] sm:$0xff]
    %v340 = vld [vmem:[#allocation7 + $0x60] sm:$0xff]
    %v341 = vld [vmem:[#allocation7 + $0x68] sm:$0xff]
    %v342 = vld [vmem:[#allocation7 + $0x70] sm:$0xff]
    %v343 = vld [vmem:[#allocation7 + $0x78] sm:$0xff]
    %v344 = vld [vmem:[#allocation7 + $0x80] sm:$0xff]
    %v345 = vld [vmem:[#allocation7 + $0x88] sm:$0xff]
    %v346 = vld [vmem:[#allocation7 + $0x90] sm:$0xff]
    %v347 = vld [vmem:[#allocation7 + $0x98] sm:$0xff]
    %v348 = vld [vmem:[#allocation7 + $0xa0] sm:$0xff]
    %v349 = vld [vmem:[#allocation7 + $0xa8] sm:$0xff]
    %v350 = vld [vmem:[#allocation7 + $0xb0] sm:$0xff]
    %v351 = vld [vmem:[#allocation7 + $0xb8] sm:$0xff]
    %v352 = vld [vmem:[#allocation7 + $0xc0] sm:$0xff]
    %v353 = vld [vmem:[#allocation7 + $0xc8] sm:$0xff]
    %v354 = vld [vmem:[#allocation7 + $0xd0] sm:$0xff]
    %v355 = vld [vmem:[#allocation7 + $0xd8] sm:$0xff]
    %v356 = vld [vmem:[#allocation7 + $0xe0] sm:$0xff]
    %v357 = vld [vmem:[#allocation7 + $0xe8] sm:$0xff]
    %v358 = vld [vmem:[#allocation7 + $0xf0] sm:$0xff]
    %v359 = vld [vmem:[#allocation7 + $0xf8] sm:$0xff]
    %360 = vmatprep.subr.mxu0 %v329
    %361 = vmatpush1.msra.mxu0 %v328
    %362 = vmatprep.subr.mxu0 %v331
    %363 = vmatpush1.msra.mxu0 %v330
    %364 = vmatprep.subr.mxu0 %v333
    %365 = vmatpush1.msra.mxu0 %v332
    %366 = vmatprep.subr.mxu0 %v335
    %367 = vmatpush1.msra.mxu0 %v334
    %368 = vmatprep.subr.mxu0 %v337
    %369 = vmatpush1.msra.mxu0 %v336
    %370 = vmatprep.subr.mxu0 %v339
    %371 = vmatpush1.msra.mxu0 %v338
    %372 = vmatprep.subr.mxu0 %v341
    %373 = vmatpush1.msra.mxu0 %v340
    %374 = vmatprep.subr.mxu0 %v343
    %375 = vmatpush1.msra.mxu0 %v342
    %376 = vmatprep.subr.mxu0 %v345
    %377 = vmatpush1.msra.mxu0 %v344
    %378 = vmatprep.subr.mxu0 %v347
    %379 = vmatpush1.msra.mxu0 %v346
    %380 = vmatprep.subr.mxu0 %v349
    %381 = vmatpush1.msra.mxu0 %v348
    %382 = vmatprep.subr.mxu0 %v351
    %383 = vmatpush1.msra.mxu0 %v350
    %384 = vmatprep.subr.mxu0 %v353
    %385 = vmatpush1.msra.mxu0 %v352
    %386 = vmatprep.subr.mxu0 %v355
    %387 = vmatpush1.msra.mxu0 %v354
    %388 = vmatprep.subr.mxu0 %v357
    %389 = vmatpush1.msra.mxu0 %v356
    %390 = vmatprep.subr.mxu0 %v359
    %391 = vmatpush1.msra.mxu0 %v358
    %392 = vmatprep.subr.mxu0 0.0
    %393 = vmatpush1.msra.mxu0 0.0
    %394 = vmatprep.subr.mxu0 0.0
    %395 = vmatpush1.msra.mxu0 0.0
    %396 = vmatprep.subr.mxu0 0.0
    %397 = vmatpush1.msra.mxu0 0.0
    %398 = vmatprep.subr.mxu0 0.0
    %399 = vmatpush1.msra.mxu0 0.0
    %400 = vmatprep.subr.mxu0 0.0
    %401 = vmatpush1.msra.mxu0 0.0
    %402 = vmatprep.subr.mxu0 0.0
    %403 = vmatpush1.msra.mxu0 0.0
    %404 = vmatprep.subr.mxu0 0.0
    %405 = vmatpush1.msra.mxu0 0.0
    %406 = vmatprep.subr.mxu0 0.0
    %407 = vmatpush1.msra.mxu0 0.0
    %408 = vmatprep.subr.mxu0 0.0
    %409 = vmatpush1.msra.mxu0 0.0
    %410 = vmatprep.subr.mxu0 0.0
    %411 = vmatpush1.msra.mxu0 0.0
    %412 = vmatprep.subr.mxu0 0.0
    %413 = vmatpush1.msra.mxu0 0.0
    %414 = vmatprep.subr.mxu0 0.0
    %415 = vmatpush1.msra.mxu0 0.0
    %416 = vmatprep.subr.mxu0 0.0
    %417 = vmatpush1.msra.mxu0 0.0
    %418 = vmatprep.subr.mxu0 0.0
    %419 = vmatpush1.msra.mxu0 0.0
    %420 = vmatprep.subr.mxu0 0.0
    %421 = vmatpush1.msra.mxu0 0.0
    %422 = vmatprep.subr.mxu0 0.0
    %423 = vmatpush1.msra.mxu0 0.0
    %424 = vmatprep.mubr.f32.mxu0 0.0
    %425 = vmatmul.mubr.f32.gmra.mrb[0].mxu0 %v327
    %v426 = vpop.f32.mrb[0].mxu0
    %v427 = vadd.f32 0.0, %v426
    %v428 = vpop.f32.mrb[0].mxu0
    %v429 = vadd.f32 0.0, %v428
    %430 = vdwg.mxu0
    %v431 = vmul.f32 %v427, %v427
    %v432 = vmul.f32 %v429, %v429
    %v433 = vld [vmem:[#allocation8] sm:$0xff]
    %v434 = vld [vmem:[#allocation8 + $0x8] sm:$0xff]
    %v435 = vld [vmem:[#allocation8 + $0x10] sm:$0xff]
    %v436 = vld [vmem:[#allocation8 + $0x18] sm:$0xff]
    %v437 = vld [vmem:[#allocation8 + $0x20] sm:$0xff]
    %v438 = vld [vmem:[#allocation8 + $0x28] sm:$0xff]
    %v439 = vld [vmem:[#allocation8 + $0x30] sm:$0xff]
    %v440 = vld [vmem:[#allocation8 + $0x38] sm:$0xff]
    %v441 = vld [vmem:[#allocation8 + $0x40] sm:$0xff]
    %v442 = vld [vmem:[#allocation8 + $0x48] sm:$0xff]
    %v443 = vld [vmem:[#allocation8 + $0x50] sm:$0xff]
    %v444 = vld [vmem:[#allocation8 + $0x58] sm:$0xff]
    %v445 = vld [vmem:[#allocation8 + $0x60] sm:$0xff]
    %v446 = vld [vmem:[#allocation8 + $0x68] sm:$0xff]
    %v447 = vld [vmem:[#allocation8 + $0x70] sm:$0xff]
    %v448 = vld [vmem:[#allocation8 + $0x78] sm:$0xff]
    %v449 = vld [vmem:[#allocation8 + $0x80] sm:$0xff]
    %v450 = vld [vmem:[#allocation8 + $0x88] sm:$0xff]
    %v451 = vld [vmem:[#allocation8 + $0x90] sm:$0xff]
    %v452 = vld [vmem:[#allocation8 + $0x98] sm:$0xff]
    %v453 = vld [vmem:[#allocation8 + $0xa0] sm:$0xff]
    %v454 = vld [vmem:[#allocation8 + $0xa8] sm:$0xff]
    %v455 = vld [vmem:[#allocation8 + $0xb0] sm:$0xff]
    %v456 = vld [vmem:[#allocation8 + $0xb8] sm:$0xff]
    %v457 = vld [vmem:[#allocation8 + $0xc0] sm:$0xff]
    %v458 = vld [vmem:[#allocation8 + $0xc8] sm:$0xff]
    %v459 = vld [vmem:[#allocation8 + $0xd0] sm:$0xff]
    %v460 = vld [vmem:[#allocation8 + $0xd8] sm:$0xff]
    %v461 = vld [vmem:[#allocation8 + $0xe0] sm:$0xff]
    %v462 = vld [vmem:[#allocation8 + $0xe8] sm:$0xff]
    %v463 = vld [vmem:[#allocation8 + $0xf0] sm:$0xff]
    %v464 = vld [vmem:[#allocation8 + $0xf8] sm:$0xff]
    %v465 = vld [vmem:[#allocation8 + $0x100] sm:$0xff]
    %v466 = vld [vmem:[#allocation8 + $0x108] sm:$0xff]
    %v467 = vld [vmem:[#allocation8 + $0x110] sm:$0xff]
    %v468 = vld [vmem:[#allocation8 + $0x118] sm:$0xff]
    %v469 = vld [vmem:[#allocation8 + $0x120] sm:$0xff]
    %v470 = vld [vmem:[#allocation8 + $0x128] sm:$0xff]
    %v471 = vld [vmem:[#allocation8 + $0x130] sm:$0xff]
    %v472 = vld [vmem:[#allocation8 + $0x138] sm:$0xff]
    %v473 = vld [vmem:[#allocation8 + $0x140] sm:$0xff]
    %v474 = vld [vmem:[#allocation8 + $0x148] sm:$0xff]
    %v475 = vld [vmem:[#allocation8 + $0x150] sm:$0xff]
    %v476 = vld [vmem:[#allocation8 + $0x158] sm:$0xff]
    %v477 = vld [vmem:[#allocation8 + $0x160] sm:$0xff]
    %v478 = vld [vmem:[#allocation8 + $0x168] sm:$0xff]
    %v479 = vld [vmem:[#allocation8 + $0x170] sm:$0xff]
    %v480 = vld [vmem:[#allocation8 + $0x178] sm:$0xff]
    %v481 = vld [vmem:[#allocation8 + $0x180] sm:$0xff]
    %v482 = vld [vmem:[#allocation8 + $0x188] sm:$0xff]
    %v483 = vld [vmem:[#allocation8 + $0x190] sm:$0xff]
    %v484 = vld [vmem:[#allocation8 + $0x198] sm:$0xff]
    %v485 = vld [vmem:[#allocation8 + $0x1a0] sm:$0xff]
    %v486 = vld [vmem:[#allocation8 + $0x1a8] sm:$0xff]
    %v487 = vld [vmem:[#allocation8 + $0x1b0] sm:$0xff]
    %v488 = vld [vmem:[#allocation8 + $0x1b8] sm:$0xff]
    %v489 = vld [vmem:[#allocation8 + $0x1c0] sm:$0xff]
    %v490 = vld [vmem:[#allocation8 + $0x1c8] sm:$0xff]
    %v491 = vld [vmem:[#allocation8 + $0x1d0] sm:$0xff]
    %v492 = vld [vmem:[#allocation8 + $0x1d8] sm:$0xff]
    %v493 = vld [vmem:[#allocation8 + $0x1e0] sm:$0xff]
    %v494 = vld [vmem:[#allocation8 + $0x1e8] sm:$0xff]
    %v495 = vld [vmem:[#allocation8 + $0x1f0] sm:$0xff]
    %v496 = vld [vmem:[#allocation8 + $0x1f8] sm:$0xff]
    %497 = vmatprep.subr.mxu0 %v434
    %498 = vmatpush1.msra.mxu0 %v433
    %499 = vmatprep.subr.mxu0 %v436
    %500 = vmatpush1.msra.mxu0 %v435
    %501 = vmatprep.subr.mxu0 %v438
    %502 = vmatpush1.msra.mxu0 %v437
    %503 = vmatprep.subr.mxu0 %v440
    %504 = vmatpush1.msra.mxu0 %v439
    %505 = vmatprep.subr.mxu0 %v442
    %506 = vmatpush1.msra.mxu0 %v441
    %507 = vmatprep.subr.mxu0 %v444
    %508 = vmatpush1.msra.mxu0 %v443
    %509 = vmatprep.subr.mxu0 %v446
    %510 = vmatpush1.msra.mxu0 %v445
    %511 = vmatprep.subr.mxu0 %v448
    %512 = vmatpush1.msra.mxu0 %v447
    %513 = vmatprep.subr.mxu0 %v450
    %514 = vmatpush1.msra.mxu0 %v449
    %515 = vmatprep.subr.mxu0 %v452
    %516 = vmatpush1.msra.mxu0 %v451
    %517 = vmatprep.subr.mxu0 %v454
    %518 = vmatpush1.msra.mxu0 %v453
    %519 = vmatprep.subr.mxu0 %v456
    %520 = vmatpush1.msra.mxu0 %v455
    %521 = vmatprep.subr.mxu0 %v458
    %522 = vmatpush1.msra.mxu0 %v457
    %523 = vmatprep.subr.mxu0 %v460
    %524 = vmatpush1.msra.mxu0 %v459
    %525 = vmatprep.subr.mxu0 %v462
    %526 = vmatpush1.msra.mxu0 %v461
    %527 = vmatprep.subr.mxu0 %v464
    %528 = vmatpush1.msra.mxu0 %v463
    %529 = vmatprep.subr.mxu0 %v466
    %530 = vmatpush1.msra.mxu0 %v465
    %531 = vmatprep.subr.mxu0 %v468
    %532 = vmatpush1.msra.mxu0 %v467
    %533 = vmatprep.subr.mxu0 %v470
    %534 = vmatpush1.msra.mxu0 %v469
    %535 = vmatprep.subr.mxu0 %v472
    %536 = vmatpush1.msra.mxu0 %v471
    %537 = vmatprep.subr.mxu0 %v474
    %538 = vmatpush1.msra.mxu0 %v473
    %539 = vmatprep.subr.mxu0 %v476
    %540 = vmatpush1.msra.mxu0 %v475
    %541 = vmatprep.subr.mxu0 %v478
    %542 = vmatpush1.msra.mxu0 %v477
    %543 = vmatprep.subr.mxu0 %v480
    %544 = vmatpush1.msra.mxu0 %v479
    %545 = vmatprep.subr.mxu0 %v482
    %546 = vmatpush1.msra.mxu0 %v481
    %547 = vmatprep.subr.mxu0 %v484
    %548 = vmatpush1.msra.mxu0 %v483
    %549 = vmatprep.subr.mxu0 %v486
    %550 = vmatpush1.msra.mxu0 %v485
    %551 = vmatprep.subr.mxu0 %v488
    %552 = vmatpush1.msra.mxu0 %v487
    %553 = vmatprep.subr.mxu0 %v490
    %554 = vmatpush1.msra.mxu0 %v489
    %555 = vmatprep.subr.mxu0 %v492
    %556 = vmatpush1.msra.mxu0 %v491
    %557 = vmatprep.subr.mxu0 %v494
    %558 = vmatpush1.msra.mxu0 %v493
    %559 = vmatprep.subr.mxu0 %v496
    %560 = vmatpush1.msra.mxu0 %v495
    %561 = vmatprep.mubr.f32.mxu0 %v432
    %562 = vmatmul.mubr.f32.gmra.mrb[0].mxu0 %v431
    %v563 = vpop.f32.mrb[0].mxu0
    %v564 = vadd.f32 1e-05, %v563
    %v565 = vpop.f32.mrb[0].mxu0
    %v566 = vadd.f32 1e-05, %v565
    %567 = vdwg.mxu0
    %v568 = vrsqrt.pop %v564
    %v569 = vrsqrt.pop %v566
    %v570 = vmul.f32 %v427, %v568
    %v571 = vmul.f32 %v429, %v569
    %v572 = vld [vmem:[%s7] sm:$0x3]
    %v574 = vlaneseq
    %v575 = vshrl.u32 %v574, 7
    %v576 = vsub.s32 0, %v575
    %v577 = vrot.slane %v572, %v576
    %v578 = vlaneseq
    %v579 = vshrl.u32 %v578, 7
    %v580 = vsub.s32 1, %v579
    %v581 = vrot.slane %v572, %v580
    %v584 = vmul.f32 %v570, %v577
    %v585 = vmul.f32 %v571, %v581
    %v586 = vld [vmem:[%s8] sm:$0x3]
    %v588 = vlaneseq
    %v589 = vshrl.u32 %v588, 7
    %v590 = vsub.s32 0, %v589
    %v591 = vrot.slane %v586, %v590
    %v592 = vlaneseq
    %v593 = vshrl.u32 %v592, 7
    %v594 = vsub.s32 1, %v593
    %v595 = vrot.slane %v586, %v594
    %v598 = vadd.f32 %v584, %v591
    %v599 = vadd.f32 %v585, %v595
    %v602 = vcombine.low %v598, %v599
    %v604 = vunpack.c.l.s4 1983009808
    %v605 = vunpack.c.0.s8 %v604
    %v606 = vlaneseq
    %v607 = vshrl.u32 %v606, 7
    %v608 = vsub.s32 %v605, %v607
    %v609 = vrot.slane %v602, %v608
    %611 = vst [vmem:[#allocation10] sm:$0xf] %v609
    // Predicated region
    $region54: #{tpu_custom_call.1} parent=1 // pred_check
      _
    $region55: #{tpu_custom_call.1} parent=1 // pred_check_branch
      %613 = sbr.rel (0) target = $region57
    $region56: #{tpu_custom_call.1} parent=1 // pred_region
      %s615 = ssub.s32 64, 64
      %616 = vsyncadd [#allocation4], %s615
      %s618 = sshll.u32 [#allocation10], 4
      %s619 = int_to_ptr.vmem [resolvable:$true] %s618
      %621 = dma.vmem_to_hbm [thread:$0]  %s619, 64, %s9, [#allocation4]
    $region57: #{tpu_custom_call.1} parent=1 // pred_fallthru
      _
    // Predicated region
    $region58: #{tpu_custom_call.1} parent=1 // pred_check
      _
    $region59: #{tpu_custom_call.1} parent=1 // pred_check_branch
      %623 = sbr.rel (0) target = $region61
    $region60: #{tpu_custom_call.1} parent=1 // pred_region
      %624 = dma.done [#allocation4], 64
    $region61: #{tpu_custom_call.1} parent=1 // pred_fallthru
      _
    %625 = vsyncpa [#allocation3], 1
    %626 = vsyncpa [#allocation6], 1
    %627 = vsyncpa [#allocation9], 1
    %628 = vsyncpa [#allocation4], 1

</llo_original>
